<compile_context>
chip_gen: v7x
topology: tpu7x:2x2x1
jax: 0.10.0
libtpu: 0.0.40
codegen_flags: <defaults>
</compile_context>

<pallas_src>
import functools

import jax
import jax.numpy as jnp
from jax import lax
from jax.experimental import pallas as pl
from jax.experimental.pallas import tpu as pltpu


# --------------------------------------------------------------------------
# small helpers
# --------------------------------------------------------------------------
def _layer_norm(x, g, b, eps):
    mu = jnp.mean(x, axis=-1, keepdims=True)
    var = jnp.mean(jnp.square(x - mu), axis=-1, keepdims=True)
    return (x - mu) * lax.rsqrt(var + eps) * g + b


def _gelu_new(x):
    # HF "gelu_new" (tanh approximation) used by GPT2MLP.
    c = jnp.float32(0.7978845608028654)  # sqrt(2/pi)
    return 0.5 * x * (1.0 + jnp.tanh(c * (x + 0.044715 * x * x * x)))


# --------------------------------------------------------------------------
# capability / sizing helpers (evaluated once, cached)
# --------------------------------------------------------------------------
@functools.lru_cache(maxsize=None)
def _vmem_limit_bytes():
    cap = None
    try:
        cap = getattr(pltpu.get_tpu_info(), "vmem_capacity_bytes", None)
    except Exception:
        cap = None
    if not cap:
        cap = 64 * 1024 * 1024            # conservative: v7x per-core VMEM
    # ~48 MiB on 64 MiB parts (v7x), ~96 MiB on 128 MiB parts (v5e/v6e).
    return int(min(cap * 3 // 4, 112 * 1024 * 1024))


def _probe_copy_kernel(x_ref, o_ref):
    o_ref[...] = x_ref[...]


@functools.lru_cache(maxsize=None)
def _supports_single_buffered_weights():
    """One-time probe: can this JAX/libtpu lower pl.Buffered(1) block specs?"""
    if not hasattr(pl, "Buffered"):
        return False
    try:
        fn = pl.pallas_call(
            _probe_copy_kernel,
            out_shape=jax.ShapeDtypeStruct((8, 128), jnp.float32),
            grid=(1,),
            in_specs=[pl.BlockSpec((8, 128), lambda i: (0, 0),
                                   pipeline_mode=pl.Buffered(1))],
            out_specs=pl.BlockSpec((8, 128), lambda i: (0, 0)),
        )
        jax.block_until_ready(fn(jnp.zeros((8, 128), jnp.float32)))
        return True
    except Exception:
        return False


def _pick_q_tile(seq_len, embed, num_heads, inner, vmem_bytes, probs_bytes):
    """Pick the q-tile length, gated by a rough per-step VMEM estimate."""
    if seq_len <= 128:
        return seq_len
    if seq_len % 128 != 0:
        # TODO(synk): pad / mask ragged sequence lengths instead of a whole-S tile.
        return seq_len
    hd = embed // num_heads
    for ts in (256, 128):
        if seq_len % ts != 0:
            continue
        scores = 2 * num_heads * ts * seq_len * 4            # f32 s + p intermediates
        probs_out = 2 * num_heads * ts * seq_len * probs_bytes  # attnw block (2x buf)
        kv = 2 * 2 * num_heads * seq_len * hd * 2            # K + V blocks, bf16, 2x buf
        tiles = 2 * 2 * ts * embed * 4 + ts * inner * 4      # x/out blocks + MLP hidden
        weights = 2 * (embed * inner + inner * embed + embed * embed)  # bf16 weights
        if scores + probs_out + kv + tiles + weights <= int(0.7 * vmem_bytes):
            return ts
    return 128


# --------------------------------------------------------------------------
# kernel 1: LN1 + fused QKV projection -> head-major bf16 Q/K/V (written once)
# --------------------------------------------------------------------------
def _qkv_kernel(x_ref, ln1_g_ref, ln1_b_ref, w_qkv_ref, b_qkv_ref,
                q_ref, k_ref, v_ref, *, num_heads, head_dim, eps):
    H, hd = num_heads, head_dim

    x = x_ref[0]                                              # (TS, E) f32
    xn = _layer_norm(x, ln1_g_ref[...], ln1_b_ref[...], eps).astype(jnp.bfloat16)

    # One full-width matmul: contraction K = E, output width N = 3E.
    qkv = jnp.dot(xn, w_qkv_ref[...], preferred_element_type=jnp.float32)
    qkv = (qkv + b_qkv_ref[...]).astype(jnp.bfloat16)         # (TS, 3E)

    # HF Conv1D column order: per head h -> [q | k | v] chunks of width hd.
    for h in range(H):
        base = 3 * hd * h
        q_ref[0, h, :, :] = qkv[:, base:base + hd]
        k_ref[0, h, :, :] = qkv[:, base + hd:base + 2 * hd]
        v_ref[0, h, :, :] = qkv[:, base + 2 * hd:base + 3 * hd]


# --------------------------------------------------------------------------
# kernel 2: attention + output projection + LN2 + MLP (+ residuals)
# --------------------------------------------------------------------------
def _attn_mlp_kernel(x_ref, q_ref, k_ref, v_ref,
                     wpa_ref, bpa_ref, ln2_g_ref, ln2_b_ref,
                     wfc_ref, bfc_ref, wpm_ref, bpm_ref,
                     out_ref, attnw_ref=None,
                     *, head_dim, eps, q_tile, exact_softmax):
    hd = head_dim
    TS = q_tile
    H = q_ref.shape[1]
    S = k_ref.shape[2]

    x_res = x_ref[0]                                          # (TS, E) f32 (residual)
    q = q_ref[0]                                              # (H, TS, hd) bf16
    k = k_ref[0]                                              # (H, S,  hd) bf16
    v = v_ref[0]                                              # (H, S,  hd) bf16

    # ---- scores (leading-batch over heads), causal mask, softmax ----
    scale = jnp.float32(1.0 / (hd ** 0.5))
    s = lax.dot_general(q, k, (((2,), (2,)), ((0,), (0,))),
                        preferred_element_type=jnp.float32) * scale   # (H, TS, S)

    q0 = pl.program_id(1) * TS
    rows = q0 + lax.broadcasted_iota(jnp.int32, (TS, S), 0)
    cols = lax.broadcasted_iota(jnp.int32, (TS, S), 1)
    s = jnp.where((cols <= rows)[None], s, jnp.float32(-10000.0))  # masked_bias fill

    m = jnp.max(s, axis=-1, keepdims=True)
    e = jnp.exp(s - m)
    denom = jnp.sum(e, axis=-1, keepdims=True)
    if exact_softmax:
        p = e / denom
    else:
        p = e * pl.reciprocal(denom, approx=True)             # EUP slot

    if attnw_ref is not None:
        attnw_ref[0] = p.astype(attnw_ref.dtype)              # one (H,TS,S) slab store

    # ---- context, merge heads, full-width output projection ----
    ctx = lax.dot_general(p.astype(jnp.bfloat16), v, (((2,), (1,)), ((0,), (0,))),
                          preferred_element_type=jnp.float32)          # (H, TS, hd)
    ctx_b = ctx.astype(jnp.bfloat16)
    ctx_m = jnp.concatenate([ctx_b[h] for h in range(H)], axis=-1)     # (TS, E)
    attn_out = jnp.dot(ctx_m, wpa_ref[...],
                       preferred_element_type=jnp.float32) + bpa_ref[...]
    h1 = attn_out + x_res                                     # residual 1

    # ---- ln_2 + MLP + residual 2 ----
    h1n = _layer_norm(h1, ln2_g_ref[...], ln2_b_ref[...], eps).astype(jnp.bfloat16)
    ff = jnp.dot(h1n, wfc_ref[...], preferred_element_type=jnp.float32) + bfc_ref[...]
    ff = _gelu_new(ff).astype(jnp.bfloat16)
    ff = jnp.dot(ff, wpm_ref[...], preferred_element_type=jnp.float32) + bpm_ref[...]

    out_ref[0] = (h1 + ff).astype(out_ref.dtype)


# --------------------------------------------------------------------------
# wrapper
# --------------------------------------------------------------------------
def _prepare_params(params):
    """One-time wrapper-side bf16 casts (weights keep the HF Conv1D layout)."""
    return {
        "ln1_g": params["ln1_g"], "ln1_b": params["ln1_b"],
        "w_qkv": params["w_attn"].astype(jnp.bfloat16),              # (E, 3E)
        "b_qkv": params["b_attn"].reshape(1, -1).astype(jnp.float32),
        "wpa": params["w_proj_attn"].astype(jnp.bfloat16),           # (E, E)
        "bpa": params["b_proj_attn"],
        "ln2_g": params["ln2_g"], "ln2_b": params["ln2_b"],
        "wfc": params["w_fc"].astype(jnp.bfloat16), "bfc": params["b_fc"],
        "wpm": params["w_proj_mlp"].astype(jnp.bfloat16), "bpm": params["b_proj_mlp"],
    }


def gpt2_block_forward(x, params, *, num_heads, eps=1e-5,
                       return_attn_probs=True, attn_probs_dtype=jnp.float32):
    B, S, E = x.shape
    hd = E // num_heads
    inner = params["w_fc"].shape[1]
    prep = _prepare_params(params)

    vmem_limit = _vmem_limit_bytes()
    probs_bytes = jnp.dtype(attn_probs_dtype).itemsize if return_attn_probs else 0
    TS = _pick_q_tile(S, E, num_heads, inner, vmem_limit, probs_bytes)
    num_t = S // TS

    single_buf = _supports_single_buffered_weights()

    def wspec(shape):
        idx = lambda b, t, _n=len(shape): (0,) * _n
        if single_buf:
            # Constant block index across the grid -> single buffer is enough.
            return pl.BlockSpec(shape, idx, pipeline_mode=pl.Buffered(1))
        return pl.BlockSpec(shape, idx)

    cparams = pltpu.CompilerParams(
        dimension_semantics=("parallel", "parallel"),
        vmem_limit_bytes=vmem_limit)

    # ---- pass 1: LN1 + fused QKV projection (Q/K/V computed exactly once) ----
    qkv_fn = pl.pallas_call(
        functools.partial(_qkv_kernel, num_heads=num_heads, head_dim=hd, eps=eps),
        out_shape=tuple(jax.ShapeDtypeStruct((B, num_heads, S, hd), jnp.bfloat16)
                        for _ in range(3)),
        grid=(B, num_t),
        in_specs=[
            pl.BlockSpec((1, TS, E), lambda b, t: (b, t, 0)),   # x q-tile
            wspec((1, E)), wspec((1, E)),                       # ln_1 gamma / beta
            wspec((E, 3 * E)), wspec((1, 3 * E)),               # c_attn W / b
        ],
        out_specs=tuple(
            pl.BlockSpec((1, num_heads, TS, hd), lambda b, t: (b, 0, t, 0))
            for _ in range(3)),
        compiler_params=cparams,
    )
    q_hm, k_hm, v_hm = qkv_fn(x, prep["ln1_g"], prep["ln1_b"],
                              prep["w_qkv"], prep["b_qkv"])

    # ---- pass 2: attention + projection + LN2 + MLP ----
    if return_attn_probs:
        out_shape = (jax.ShapeDtypeStruct((B, S, E), x.dtype),
                     jax.ShapeDtypeStruct((B, num_heads, S, S), attn_probs_dtype))
        out_specs = (pl.BlockSpec((1, TS, E), lambda b, t: (b, t, 0)),
                     pl.BlockSpec((1, num_heads, TS, S), lambda b, t: (b, 0, t, 0)))
    else:
        out_shape = jax.ShapeDtypeStruct((B, S, E), x.dtype)
        out_specs = pl.BlockSpec((1, TS, E), lambda b, t: (b, t, 0))

    attn_fn = pl.pallas_call(
        functools.partial(_attn_mlp_kernel, head_dim=hd, eps=eps, q_tile=TS,
                          exact_softmax=return_attn_probs),
        out_shape=out_shape,
        grid=(B, num_t),
        in_specs=[
            pl.BlockSpec((1, TS, E), lambda b, t: (b, t, 0)),                 # residual
            pl.BlockSpec((1, num_heads, TS, hd), lambda b, t: (b, 0, t, 0)),  # Q tile
            pl.BlockSpec((1, num_heads, S, hd), lambda b, t: (b, 0, 0, 0)),   # K (full S)
            pl.BlockSpec((1, num_heads, S, hd), lambda b, t: (b, 0, 0, 0)),   # V (full S)
            wspec((E, E)), wspec((1, E)),                    # attn c_proj W / b
            wspec((1, E)), wspec((1, E)),                    # ln_2 gamma / beta
            wspec((E, inner)), wspec((1, inner)),            # mlp c_fc W / b
            wspec((inner, E)), wspec((1, E)),                # mlp c_proj W / b
        ],
        out_specs=out_specs,
        compiler_params=cparams,
    )
    return attn_fn(x, q_hm, k_hm, v_hm,
                   prep["wpa"], prep["bpa"], prep["ln2_g"], prep["ln2_b"],
                   prep["wfc"], prep["bfc"], prep["wpm"], prep["bpm"])


# --------------------------------------------------------------------------
# pure-JAX reference (mirrors the PyTorch GPT2Block, all f32)
# --------------------------------------------------------------------------
def ref_forward(x, params, *, num_heads, eps=1e-5):
    B, S, E = x.shape
    hd = E // num_heads

    def ln(t, g, b):
        mu = t.mean(-1, keepdims=True)
        var = ((t - mu) ** 2).mean(-1, keepdims=True)
        return (t - mu) / jnp.sqrt(var + eps) * g + b

    xn = ln(x, params["ln1_g"], params["ln1_b"])
    qkv = xn @ params["w_attn"] + params["b_attn"]                     # (B,S,3E)
    qkv = qkv.reshape(B, S, num_heads, 3 * hd).transpose(0, 2, 1, 3)   # (B,H,S,3hd)
    q, k, v = qkv[..., :hd], qkv[..., hd:2 * hd], qkv[..., 2 * hd:]
    s = jnp.einsum("bhqd,bhkd->bhqk", q, k) / (hd ** 0.5)
    causal = jnp.tril(jnp.ones((S, S), dtype=bool))
    s = jnp.where(causal, s, jnp.float32(-10000.0))
    p = jax.nn.softmax(s, axis=-1)
    o = jnp.einsum("bhqk,bhkd->bhqd", p, v).transpose(0, 2, 1, 3).reshape(B, S, E)
    o = o @ params["w_proj_attn"] + params["b_proj_attn"]
    h1 = o + x
    h1n = ln(h1, params["ln2_g"], params["ln2_b"])
    ff = _gelu_new(h1n @ params["w_fc"] + params["b_fc"])
    ff = ff @ params["w_proj_mlp"] + params["b_proj_mlp"]
    return h1 + ff, p


# --------------------------------------------------------------------------
# demo / self-check
# --------------------------------------------------------------------------
if __name__ == "__main__":
    # Small GPT2 config: hidden=64, heads=4, seq=16, batch=2, inner=4*hidden.
    B, S, E, H = 2, 16, 64, 4
    INNER = 4 * E
    EPS = 1e-5

    key = jax.random.PRNGKey(0)
    ks = jax.random.split(key, 12)
    std = 0.02
    params = {
        "ln1_g": jnp.ones((1, E), jnp.float32),
        "ln1_b": jnp.zeros((1, E), jnp.float32),
        "w_attn": std * jax.random.normal(ks[0], (E, 3 * E), jnp.float32),
        "b_attn": std * jax.random.normal(ks[1], (1, 3 * E), jnp.float32),
        "w_proj_attn": std * jax.random.normal(ks[2], (E, E), jnp.float32),
        "b_proj_attn": std * jax.random.normal(ks[3], (1, E), jnp.float32),
        "ln2_g": jnp.ones((1, E), jnp.float32),
        "ln2_b": jnp.zeros((1, E), jnp.float32),
        "w_fc": std * jax.random.normal(ks[4], (E, INNER), jnp.float32),
        "b_fc": std * jax.random.normal(ks[5], (1, INNER), jnp.float32),
        "w_proj_mlp": std * jax.random.normal(ks[6], (INNER, E), jnp.float32),
        "b_proj_mlp": std * jax.random.normal(ks[7], (1, E), jnp.float32),
    }

    x = jax.random.normal(ks[8], (B, S, E), jnp.float32)

    hidden, attn_w = gpt2_block_forward(x, params, num_heads=H, eps=EPS,
                                        return_attn_probs=True)
    hidden = jax.block_until_ready(hidden)
    attn_w = jax.block_until_ready(attn_w)

    hidden_ref, attn_w_ref = ref_forward(x, params, num_heads=H, eps=EPS)

    assert hidden.shape == (B, S, E)
    assert attn_w.shape == (B, H, S, S)
    # Kernel matmuls use bf16 operands (f32 accumulation) -> tolerance looser
    # than a pure-f32 comparison.
    assert jnp.allclose(hidden, hidden_ref, atol=3e-2, rtol=3e-2)
    assert jnp.allclose(attn_w, attn_w_ref, atol=1e-2, rtol=1e-2)

    print("KERNEL_OK")
</pallas_src>

<mosaic_0001>
module attributes {stable_mosaic.version = 11 : i64} {
  func.func @_probe_copy_kernel(%arg0: i32, %arg1: memref<8x128xf32, #tpu.memory_space<vmem>>, %arg2: memref<8x128xf32, #tpu.memory_space<vmem>>) attributes {dimension_semantics = [#tpu.dimension_semantics<arbitrary>], iteration_bounds = array<i64: 1>, scalar_prefetch = 0 : i64, scratch_operands = 0 : i64, tpu.core_type = #tpu.core_type<tc>, window_params = [{pipeline_mode = #tpu.pipeline_mode<synchronous>, transform_indices = @transform_0, window_bounds = array<i64: 8, 128>}, {pipeline_mode = #tpu.pipeline_mode<synchronous>, transform_indices = @transform_1, window_bounds = array<i64: 8, 128>}]} {
    %c0 = arith.constant 0 : index
    %c0_0 = arith.constant 0 : index
    %0 = vector.load %arg1[%c0, %c0_0] : memref<8x128xf32, #tpu.memory_space<vmem>>, vector<8x128xf32>
    %c0_1 = arith.constant 0 : index
    %c0_2 = arith.constant 0 : index
    %1 = vector.load %arg2[%c0_1, %c0_2] : memref<8x128xf32, #tpu.memory_space<vmem>>, vector<8x128xf32>
    tpu.vector_store %arg2[%c0_1, %c0_2], %0 {strides = array<i32>} : memref<8x128xf32, #tpu.memory_space<vmem>>, vector<8x128xf32>,
    return
  }
  func.func @transform_0(%arg0: i32) -> (i32, i32) {
    %c0_i32 = arith.constant 0 : i32
    %c0_i32_0 = arith.constant 0 : i32
    %c0_i32_1 = arith.constant 0 : i32
    return %c0_i32, %c0_i32_0 : i32, i32
  }
  func.func @transform_1(%arg0: i32) -> (i32, i32) {
    %c0_i32 = arith.constant 0 : i32
    %c0_i32_0 = arith.constant 0 : i32
    %c0_i32_1 = arith.constant 0 : i32
    return %c0_i32, %c0_i32_0 : i32, i32
  }
}

module attributes {stable_mosaic.version = 11 : i64} {
  func.func @_qkv_kernel(%arg0: i32, %arg1: i32, %arg2: memref<1x16x64xf32, #tpu.memory_space<vmem>>, %arg3: memref<1x64xf32, #tpu.memory_space<vmem>>, %arg4: memref<1x64xf32, #tpu.memory_space<vmem>>, %arg5: memref<64x192xbf16, #tpu.memory_space<vmem>>, %arg6: memref<1x192xf32, #tpu.memory_space<vmem>>, %arg7: memref<1x4x16x16xbf16, #tpu.memory_space<vmem>>, %arg8: memref<1x4x16x16xbf16, #tpu.memory_space<vmem>>, %arg9: memref<1x4x16x16xbf16, #tpu.memory_space<vmem>>) attributes {dimension_semantics = [#tpu.dimension_semantics<parallel>, #tpu.dimension_semantics<parallel>], iteration_bounds = array<i64: 2, 1>, scalar_prefetch = 0 : i64, scratch_operands = 0 : i64, tpu.core_type = #tpu.core_type<tc>, window_params = [{transform_indices = @transform_0, window_bounds = array<i64: 1, 16, 64>}, {pipeline_mode = #tpu.pipeline_mode<synchronous>, transform_indices = @transform_1, window_bounds = array<i64: 1, 64>}, {pipeline_mode = #tpu.pipeline_mode<synchronous>, transform_indices = @transform_2, window_bounds = array<i64: 1, 64>}, {pipeline_mode = #tpu.pipeline_mode<synchronous>, transform_indices = @transform_3, window_bounds = array<i64: 64, 192>}, {pipeline_mode = #tpu.pipeline_mode<synchronous>, transform_indices = @transform_4, window_bounds = array<i64: 1, 192>}, {transform_indices = @transform_5, window_bounds = array<i64: 1, 4, 16, 16>}, {transform_indices = @transform_6, window_bounds = array<i64: 1, 4, 16, 16>}, {transform_indices = @transform_7, window_bounds = array<i64: 1, 4, 16, 16>}]} {
    %c0 = arith.constant 0 : index
    %c0_0 = arith.constant 0 : index
    %c0_1 = arith.constant 0 : index
    %0 = vector.load %arg2[%c0, %c0_0, %c0_1] : memref<1x16x64xf32, #tpu.memory_space<vmem>>, vector<1x16x64xf32>
    %1 = vector.shape_cast %0 : vector<1x16x64xf32> to vector<16x64xf32>
    %c0_2 = arith.constant 0 : index
    %c0_3 = arith.constant 0 : index
    %2 = vector.load %arg3[%c0_2, %c0_3] : memref<1x64xf32, #tpu.memory_space<vmem>>, vector<1x64xf32>
    %c0_4 = arith.constant 0 : index
    %c0_5 = arith.constant 0 : index
    %3 = vector.load %arg4[%c0_4, %c0_5] : memref<1x64xf32, #tpu.memory_space<vmem>>, vector<1x64xf32>
    %cst = arith.constant dense<0.000000e+00> : vector<16xf32>
    %4 = vector.multi_reduction <add>, %1, %cst [1] : vector<16x64xf32> to vector<16xf32>
    %5 = vector.shape_cast %4 : vector<16xf32> to vector<16x1xf32>
    %cst_6 = arith.constant 6.400000e+01 : f32
    %6 = vector.broadcast %cst_6 : f32 to vector<16x1xf32>
    %7 = arith.divf %5, %6 : vector<16x1xf32>
    %8 = vector.broadcast %7 : vector<16x1xf32> to vector<16x64xf32>
    %9 = arith.subf %1, %8 : vector<16x64xf32>
    %10 = arith.mulf %9, %9 : vector<16x64xf32>
    %cst_7 = arith.constant dense<0.000000e+00> : vector<16xf32>
    %11 = vector.multi_reduction <add>, %10, %cst_7 [1] : vector<16x64xf32> to vector<16xf32>
    %12 = vector.shape_cast %11 : vector<16xf32> to vector<16x1xf32>
    %cst_8 = arith.constant 6.400000e+01 : f32
    %13 = vector.broadcast %cst_8 : f32 to vector<16x1xf32>
    %14 = arith.divf %12, %13 : vector<16x1xf32>
    %15 = vector.broadcast %7 : vector<16x1xf32> to vector<16x64xf32>
    %16 = arith.subf %1, %15 : vector<16x64xf32>
    %cst_9 = arith.constant 9.99999974E-6 : f32
    %17 = vector.broadcast %cst_9 : f32 to vector<16x1xf32>
    %18 = arith.addf %14, %17 : vector<16x1xf32>
    %19 = math.rsqrt %18 : vector<16x1xf32>
    %20 = vector.broadcast %19 : vector<16x1xf32> to vector<16x64xf32>
    %21 = arith.mulf %16, %20 : vector<16x64xf32>
    %22 = vector.broadcast %2 : vector<1x64xf32> to vector<16x64xf32>
    %23 = arith.mulf %21, %22 : vector<16x64xf32>
    %24 = vector.broadcast %3 : vector<1x64xf32> to vector<16x64xf32>
    %25 = arith.addf %23, %24 : vector<16x64xf32>
    %26 = arith.truncf %25 : vector<16x64xf32> to vector<16x64xbf16>
    %c0_10 = arith.constant 0 : index
    %c0_11 = arith.constant 0 : index
    %27 = vector.load %arg5[%c0_10, %c0_11] : memref<64x192xbf16, #tpu.memory_space<vmem>>, vector<64x192xbf16>
    %cst_12 = arith.constant dense<0.000000e+00> : vector<16x192xf32>
    %28 = tpu.matmul %26, %27, %cst_12 {dimension_numbers = #tpu.dot_dimension_numbers<[1], [0], [0], [1], [0, 0, 1, 1], [], []>} : vector<16x64xbf16>, vector<64x192xbf16>, vector<16x192xf32> -> vector<16x192xf32>
    %c0_13 = arith.constant 0 : index
    %c0_14 = arith.constant 0 : index
    %29 = vector.load %arg6[%c0_13, %c0_14] : memref<1x192xf32, #tpu.memory_space<vmem>>, vector<1x192xf32>
    %30 = vector.broadcast %29 : vector<1x192xf32> to vector<16x192xf32>
    %31 = arith.addf %28, %30 : vector<16x192xf32>
    %32 = arith.truncf %31 : vector<16x192xf32> to vector<16x192xbf16>
    %33 = vector.extract_strided_slice %32 {offsets = [0, 0], sizes = [16, 16], strides = [1, 1]} : vector<16x192xbf16> to vector<16x16xbf16>
    %c0_15 = arith.constant 0 : index
    %c0_16 = arith.constant 0 : index
    %c0_17 = arith.constant 0 : index
    %c0_18 = arith.constant 0 : index
    %34 = vector.load %arg7[%c0_15, %c0_16, %c0_17, %c0_18] : memref<1x4x16x16xbf16, #tpu.memory_space<vmem>>, vector<1x1x16x16xbf16>
    %35 = vector.shape_cast %34 : vector<1x1x16x16xbf16> to vector<16x16xbf16>
    %36 = vector.shape_cast %33 : vector<16x16xbf16> to vector<1x1x16x16xbf16>
    tpu.vector_store %arg7[%c0_15, %c0_16, %c0_17, %c0_18], %36 {strides = array<i32>} : memref<1x4x16x16xbf16, #tpu.memory_space<vmem>>, vector<1x1x16x16xbf16>,
    %37 = vector.extract_strided_slice %32 {offsets = [0, 16], sizes = [16, 16], strides = [1, 1]} : vector<16x192xbf16> to vector<16x16xbf16>
    %c0_19 = arith.constant 0 : index
    %c0_20 = arith.constant 0 : index
    %c0_21 = arith.constant 0 : index
    %c0_22 = arith.constant 0 : index
    %38 = vector.load %arg8[%c0_19, %c0_20, %c0_21, %c0_22] : memref<1x4x16x16xbf16, #tpu.memory_space<vmem>>, vector<1x1x16x16xbf16>
    %39 = vector.shape_cast %38 : vector<1x1x16x16xbf16> to vector<16x16xbf16>
    %40 = vector.shape_cast %37 : vector<16x16xbf16> to vector<1x1x16x16xbf16>
    tpu.vector_store %arg8[%c0_19, %c0_20, %c0_21, %c0_22], %40 {strides = array<i32>} : memref<1x4x16x16xbf16, #tpu.memory_space<vmem>>, vector<1x1x16x16xbf16>,
    %41 = vector.extract_strided_slice %32 {offsets = [0, 32], sizes = [16, 16], strides = [1, 1]} : vector<16x192xbf16> to vector<16x16xbf16>
    %c0_23 = arith.constant 0 : index
    %c0_24 = arith.constant 0 : index
    %c0_25 = arith.constant 0 : index
    %c0_26 = arith.constant 0 : index
    %42 = vector.load %arg9[%c0_23, %c0_24, %c0_25, %c0_26] : memref<1x4x16x16xbf16, #tpu.memory_space<vmem>>, vector<1x1x16x16xbf16>
    %43 = vector.shape_cast %42 : vector<1x1x16x16xbf16> to vector<16x16xbf16>
    %44 = vector.shape_cast %41 : vector<16x16xbf16> to vector<1x1x16x16xbf16>
    tpu.vector_store %arg9[%c0_23, %c0_24, %c0_25, %c0_26], %44 {strides = array<i32>} : memref<1x4x16x16xbf16, #tpu.memory_space<vmem>>, vector<1x1x16x16xbf16>,
    %45 = vector.extract_strided_slice %32 {offsets = [0, 48], sizes = [16, 16], strides = [1, 1]} : vector<16x192xbf16> to vector<16x16xbf16>
    %c0_27 = arith.constant 0 : index
    %c1 = arith.constant 1 : index
    %c0_28 = arith.constant 0 : index
    %c0_29 = arith.constant 0 : index
    %46 = vector.load %arg7[%c0_27, %c1, %c0_28, %c0_29] : memref<1x4x16x16xbf16, #tpu.memory_space<vmem>>, vector<1x1x16x16xbf16>
    %47 = vector.shape_cast %46 : vector<1x1x16x16xbf16> to vector<16x16xbf16>
    %48 = vector.shape_cast %45 : vector<16x16xbf16> to vector<1x1x16x16xbf16>
    tpu.vector_store %arg7[%c0_27, %c1, %c0_28, %c0_29], %48 {strides = array<i32>} : memref<1x4x16x16xbf16, #tpu.memory_space<vmem>>, vector<1x1x16x16xbf16>,
    %49 = vector.extract_strided_slice %32 {offsets = [0, 64], sizes = [16, 16], strides = [1, 1]} : vector<16x192xbf16> to vector<16x16xbf16>
    %c0_30 = arith.constant 0 : index
    %c1_31 = arith.constant 1 : index
    %c0_32 = arith.constant 0 : index
    %c0_33 = arith.constant 0 : index
    %50 = vector.load %arg8[%c0_30, %c1_31, %c0_32, %c0_33] : memref<1x4x16x16xbf16, #tpu.memory_space<vmem>>, vector<1x1x16x16xbf16>
    %51 = vector.shape_cast %50 : vector<1x1x16x16xbf16> to vector<16x16xbf16>
    %52 = vector.shape_cast %49 : vector<16x16xbf16> to vector<1x1x16x16xbf16>
    tpu.vector_store %arg8[%c0_30, %c1_31, %c0_32, %c0_33], %52 {strides = array<i32>} : memref<1x4x16x16xbf16, #tpu.memory_space<vmem>>, vector<1x1x16x16xbf16>,
    %53 = vector.extract_strided_slice %32 {offsets = [0, 80], sizes = [16, 16], strides = [1, 1]} : vector<16x192xbf16> to vector<16x16xbf16>
    %c0_34 = arith.constant 0 : index
    %c1_35 = arith.constant 1 : index
    %c0_36 = arith.constant 0 : index
    %c0_37 = arith.constant 0 : index
    %54 = vector.load %arg9[%c0_34, %c1_35, %c0_36, %c0_37] : memref<1x4x16x16xbf16, #tpu.memory_space<vmem>>, vector<1x1x16x16xbf16>
    %55 = vector.shape_cast %54 : vector<1x1x16x16xbf16> to vector<16x16xbf16>
    %56 = vector.shape_cast %53 : vector<16x16xbf16> to vector<1x1x16x16xbf16>
    tpu.vector_store %arg9[%c0_34, %c1_35, %c0_36, %c0_37], %56 {strides = array<i32>} : memref<1x4x16x16xbf16, #tpu.memory_space<vmem>>, vector<1x1x16x16xbf16>,
    %57 = vector.extract_strided_slice %32 {offsets = [0, 96], sizes = [16, 16], strides = [1, 1]} : vector<16x192xbf16> to vector<16x16xbf16>
    %c0_38 = arith.constant 0 : index
    %c2 = arith.constant 2 : index
    %c0_39 = arith.constant 0 : index
    %c0_40 = arith.constant 0 : index
    %58 = vector.load %arg7[%c0_38, %c2, %c0_39, %c0_40] : memref<1x4x16x16xbf16, #tpu.memory_space<vmem>>, vector<1x1x16x16xbf16>
    %59 = vector.shape_cast %58 : vector<1x1x16x16xbf16> to vector<16x16xbf16>
    %60 = vector.shape_cast %57 : vector<16x16xbf16> to vector<1x1x16x16xbf16>
    tpu.vector_store %arg7[%c0_38, %c2, %c0_39, %c0_40], %60 {strides = array<i32>} : memref<1x4x16x16xbf16, #tpu.memory_space<vmem>>, vector<1x1x16x16xbf16>,
    %61 = vector.extract_strided_slice %32 {offsets = [0, 112], sizes = [16, 16], strides = [1, 1]} : vector<16x192xbf16> to vector<16x16xbf16>
    %c0_41 = arith.constant 0 : index
    %c2_42 = arith.constant 2 : index
    %c0_43 = arith.constant 0 : index
    %c0_44 = arith.constant 0 : index
    %62 = vector.load %arg8[%c0_41, %c2_42, %c0_43, %c0_44] : memref<1x4x16x16xbf16, #tpu.memory_space<vmem>>, vector<1x1x16x16xbf16>
    %63 = vector.shape_cast %62 : vector<1x1x16x16xbf16> to vector<16x16xbf16>
    %64 = vector.shape_cast %61 : vector<16x16xbf16> to vector<1x1x16x16xbf16>
    tpu.vector_store %arg8[%c0_41, %c2_42, %c0_43, %c0_44], %64 {strides = array<i32>} : memref<1x4x16x16xbf16, #tpu.memory_space<vmem>>, vector<1x1x16x16xbf16>,
    %65 = vector.extract_strided_slice %32 {offsets = [0, 128], sizes = [16, 16], strides = [1, 1]} : vector<16x192xbf16> to vector<16x16xbf16>
    %c0_45 = arith.constant 0 : index
    %c2_46 = arith.constant 2 : index
    %c0_47 = arith.constant 0 : index
    %c0_48 = arith.constant 0 : index
    %66 = vector.load %arg9[%c0_45, %c2_46, %c0_47, %c0_48] : memref<1x4x16x16xbf16, #tpu.memory_space<vmem>>, vector<1x1x16x16xbf16>
    %67 = vector.shape_cast %66 : vector<1x1x16x16xbf16> to vector<16x16xbf16>
    %68 = vector.shape_cast %65 : vector<16x16xbf16> to vector<1x1x16x16xbf16>
    tpu.vector_store %arg9[%c0_45, %c2_46, %c0_47, %c0_48], %68 {strides = array<i32>} : memref<1x4x16x16xbf16, #tpu.memory_space<vmem>>, vector<1x1x16x16xbf16>,
    %69 = vector.extract_strided_slice %32 {offsets = [0, 144], sizes = [16, 16], strides = [1, 1]} : vector<16x192xbf16> to vector<16x16xbf16>
    %c0_49 = arith.constant 0 : index
    %c3 = arith.constant 3 : index
    %c0_50 = arith.constant 0 : index
    %c0_51 = arith.constant 0 : index
    %70 = vector.load %arg7[%c0_49, %c3, %c0_50, %c0_51] : memref<1x4x16x16xbf16, #tpu.memory_space<vmem>>, vector<1x1x16x16xbf16>
    %71 = vector.shape_cast %70 : vector<1x1x16x16xbf16> to vector<16x16xbf16>
    %72 = vector.shape_cast %69 : vector<16x16xbf16> to vector<1x1x16x16xbf16>
    tpu.vector_store %arg7[%c0_49, %c3, %c0_50, %c0_51], %72 {strides = array<i32>} : memref<1x4x16x16xbf16, #tpu.memory_space<vmem>>, vector<1x1x16x16xbf16>,
    %73 = vector.extract_strided_slice %32 {offsets = [0, 160], sizes = [16, 16], strides = [1, 1]} : vector<16x192xbf16> to vector<16x16xbf16>
    %c0_52 = arith.constant 0 : index
    %c3_53 = arith.constant 3 : index
    %c0_54 = arith.constant 0 : index
    %c0_55 = arith.constant 0 : index
    %74 = vector.load %arg8[%c0_52, %c3_53, %c0_54, %c0_55] : memref<1x4x16x16xbf16, #tpu.memory_space<vmem>>, vector<1x1x16x16xbf16>
    %75 = vector.shape_cast %74 : vector<1x1x16x16xbf16> to vector<16x16xbf16>
    %76 = vector.shape_cast %73 : vector<16x16xbf16> to vector<1x1x16x16xbf16>
    tpu.vector_store %arg8[%c0_52, %c3_53, %c0_54, %c0_55], %76 {strides = array<i32>} : memref<1x4x16x16xbf16, #tpu.memory_space<vmem>>, vector<1x1x16x16xbf16>,
    %77 = vector.extract_strided_slice %32 {offsets = [0, 176], sizes = [16, 16], strides = [1, 1]} : vector<16x192xbf16> to vector<16x16xbf16>
    %c0_56 = arith.constant 0 : index
    %c3_57 = arith.constant 3 : index
    %c0_58 = arith.constant 0 : index
    %c0_59 = arith.constant 0 : index
    %78 = vector.load %arg9[%c0_56, %c3_57, %c0_58, %c0_59] : memref<1x4x16x16xbf16, #tpu.memory_space<vmem>>, vector<1x1x16x16xbf16>
    %79 = vector.shape_cast %78 : vector<1x1x16x16xbf16> to vector<16x16xbf16>
    %80 = vector.shape_cast %77 : vector<16x16xbf16> to vector<1x1x16x16xbf16>
    tpu.vector_store %arg9[%c0_56, %c3_57, %c0_58, %c0_59], %80 {strides = array<i32>} : memref<1x4x16x16xbf16, #tpu.memory_space<vmem>>, vector<1x1x16x16xbf16>,
    return
  }
  func.func @transform_0(%arg0: i32, %arg1: i32) -> (i32, i32, i32) {
    %c0_i32 = arith.constant 0 : i32
    %c0_i32_0 = arith.constant 0 : i32
    return %arg0, %arg1, %c0_i32 : i32, i32, i32
  }
  func.func @transform_1(%arg0: i32, %arg1: i32) -> (i32, i32) {
    %c0_i32 = arith.constant 0 : i32
    %c0_i32_0 = arith.constant 0 : i32
    %c0_i32_1 = arith.constant 0 : i32
    return %c0_i32, %c0_i32_0 : i32, i32
  }
  func.func @transform_2(%arg0: i32, %arg1: i32) -> (i32, i32) {
    %c0_i32 = arith.constant 0 : i32
    %c0_i32_0 = arith.constant 0 : i32
    %c0_i32_1 = arith.constant 0 : i32
    return %c0_i32, %c0_i32_0 : i32, i32
  }
  func.func @transform_3(%arg0: i32, %arg1: i32) -> (i32, i32) {
    %c0_i32 = arith.constant 0 : i32
    %c0_i32_0 = arith.constant 0 : i32
    %c0_i32_1 = arith.constant 0 : i32
    return %c0_i32, %c0_i32_0 : i32, i32
  }
  func.func @transform_4(%arg0: i32, %arg1: i32) -> (i32, i32) {
    %c0_i32 = arith.constant 0 : i32
    %c0_i32_0 = arith.constant 0 : i32
    %c0_i32_1 = arith.constant 0 : i32
    return %c0_i32, %c0_i32_0 : i32, i32
  }
  func.func @transform_5(%arg0: i32, %arg1: i32) -> (i32, i32, i32, i32) {
    %c0_i32 = arith.constant 0 : i32
    %c0_i32_0 = arith.constant 0 : i32
    %c0_i32_1 = arith.constant 0 : i32
    return %arg0, %c0_i32, %arg1, %c0_i32_0 : i32, i32, i32, i32
  }
  func.func @transform_6(%arg0: i32, %arg1: i32) -> (i32, i32, i32, i32) {
    %c0_i32 = arith.constant 0 : i32
    %c0_i32_0 = arith.constant 0 : i32
    %c0_i32_1 = arith.constant 0 : i32
    return %arg0, %c0_i32, %arg1, %c0_i32_0 : i32, i32, i32, i32
  }
  func.func @transform_7(%arg0: i32, %arg1: i32) -> (i32, i32, i32, i32) {
    %c0_i32 = arith.constant 0 : i32
    %c0_i32_0 = arith.constant 0 : i32
    %c0_i32_1 = arith.constant 0 : i32
    return %arg0, %c0_i32, %arg1, %c0_i32_0 : i32, i32, i32, i32
  }
}

</mosaic_0001>

<llo_original>
// kernel: tpu_custom_call.1
$region0: #{tpu_custom_call.1}
  #allocation0 [shape = 'u32[]', space=smem, size = 0x4, offset = 0x4, fixed_abs, tag = 'smem constant byte address 0x4 - core index']
  #allocation1 [shape = 'u32[144,128]{1,0:T(1,128)}', space=vmem, size = 0x12000, scoped, tag = 'internal scratch']
  %s0 = inlined_call_operand.hbm [shape: f32[8,128], index: 0, kind: input, shape index: {}]
  %s1 = inlined_call_operand.hbm [shape: f32[8,128], index: 1, kind: output, shape index: {}]
  %s2 = sld [smem:[#allocation0]]
  $region18: #{tpu_custom_call.1} parent=0
    _
  %s4 = ssub.s32 1, %s2
  %s5 = scalar_select 0, %s4, %s2
  $region1: #{tpu_custom_call.1} parent=0
    #allocation2 [shape = 'u8[4096]{0}', space=vmem, size = 0x1000, scoped, tag = 'input window, operand 0, single buffered']
    #allocation3 [shape = 's32[1]{0}', space=sflag, size = 0x4, scoped, tag = 'scoped memory for tpu_custom_call.1']
    #allocation4 [shape = 's32[1]{0}', space=sflag, size = 0x4, scoped, tag = 'scoped memory for tpu_custom_call.1']
    #allocation5 [shape = 'u8[4096]{0}', space=vmem, size = 0x1000, scoped, tag = 'output window, operand 0, single buffered']
    %6 = vsyncpa [#allocation3], 0
    %7 = vsyncpa [#allocation4], 0
    // Predicated region
    $region2: #{tpu_custom_call.1} parent=1 // pred_check
      _
    $region3: #{tpu_custom_call.1} parent=1 // pred_check_branch
      %9 = sbr.rel (0) target = $region5
    $region4: #{tpu_custom_call.1} parent=1 // pred_region
      %s11 = ssub.s32 128, 128
      %12 = vsyncadd [#allocation3], %s11
      %s14 = sshll.u32 [#allocation2], 4
      %s15 = int_to_ptr.vmem [resolvable:$true] %s14
      %17 = dma.hbm_to_vmem [thread:$0]  %s0, 128, %s15, [#allocation3]
    $region5: #{tpu_custom_call.1} parent=1 // pred_fallthru
      _
    // Predicated region
    $region6: #{tpu_custom_call.1} parent=1 // pred_check
      _
    $region7: #{tpu_custom_call.1} parent=1 // pred_check_branch
      %19 = sbr.rel (0) target = $region9
    $region8: #{tpu_custom_call.1} parent=1 // pred_region
      %20 = dma.done [#allocation3], 128
    $region9: #{tpu_custom_call.1} parent=1 // pred_fallthru
      _
    %v21 = vld [vmem:[#allocation2] sm:$0xff]
    %22 = vst [vmem:[#allocation5] sm:$0xff] %v21
    // Predicated region
    $region10: #{tpu_custom_call.1} parent=1 // pred_check
      _
    $region11: #{tpu_custom_call.1} parent=1 // pred_check_branch
      %24 = sbr.rel (0) target = $region13
    $region12: #{tpu_custom_call.1} parent=1 // pred_region
      %s26 = ssub.s32 128, 128
      %27 = vsyncadd [#allocation4], %s26
      %s29 = sshll.u32 [#allocation5], 4
      %s30 = int_to_ptr.vmem [resolvable:$true] %s29
      %32 = dma.vmem_to_hbm [thread:$0]  %s30, 128, %s1, [#allocation4]
    $region13: #{tpu_custom_call.1} parent=1 // pred_fallthru
      _
    // Predicated region
    $region14: #{tpu_custom_call.1} parent=1 // pred_check
      _
    $region15: #{tpu_custom_call.1} parent=1 // pred_check_branch
      %34 = sbr.rel (0) target = $region17
    $region16: #{tpu_custom_call.1} parent=1 // pred_region
      %35 = dma.done [#allocation4], 128
    $region17: #{tpu_custom_call.1} parent=1 // pred_fallthru
      _
    %36 = vsyncpa [#allocation3], 1
    %37 = vsyncpa [#allocation4], 1

// kernel: tpu_custom_call.1
$region0: #{tpu_custom_call.1}
  #allocation0 [shape = 'u32[]', space=smem, size = 0x4, offset = 0x4, fixed_abs, tag = 'smem constant byte address 0x4 - core index']
  #allocation1 [shape = 'u32[144,128]{1,0:T(1,128)}', space=vmem, size = 0x12000, scoped, tag = 'internal scratch']
  %s0 = inlined_call_operand.hbm [shape: f32[2,16,64], index: 0, kind: input, shape index: {}]
  %s1 = inlined_call_operand.vmem [shape: f32[1,64], index: 1, kind: input, shape index: {}]
  %s2 = inlined_call_operand.vmem [shape: f32[1,64], index: 2, kind: input, shape index: {}]
  %s3 = inlined_call_operand.hbm [shape: bf16[64,192], index: 3, kind: input, shape index: {}]
  %s4 = inlined_call_operand.vmem [shape: f32[1,192], index: 4, kind: input, shape index: {}]
  %s5 = inlined_call_operand.hbm [shape: bf16[2,4,16,16], index: 5, kind: output, shape index: {0}]
  %s6 = inlined_call_operand.hbm [shape: bf16[2,4,16,16], index: 6, kind: output, shape index: {1}]
  %s7 = inlined_call_operand.hbm [shape: bf16[2,4,16,16], index: 7, kind: output, shape index: {2}]
  %8 = xla_tuple %s5, %s6, %s7
  %s9 = sld [smem:[#allocation0]]
  $region77: #{tpu_custom_call.1} parent=0
    _
  %s11 = ssub.s32 1, %s9
  %s12 = scalar_select 0, %s11, %s9
  $region1: #{tpu_custom_call.1} parent=0
    #allocation2 [shape = 'u8[16384]{0}', space=vmem, size = 0x4000, scoped, tag = 'input window, operand 0']
    #allocation3 [shape = 's32[2]{0}', space=sflag, size = 0x8, scoped, tag = 'scoped memory for tpu_custom_call.1']
    #allocation4 [shape = 's32[2]{0}', space=sflag, size = 0x8, scoped, tag = 'scoped memory for tpu_custom_call.1']
    #allocation5 [shape = 'u8[32768]{0}', space=vmem, size = 0x8000, scoped, tag = 'input window, operand 3, single buffered']
    #allocation6 [shape = 's32[1]{0}', space=sflag, size = 0x4, scoped, tag = 'scoped memory for tpu_custom_call.1']
    #allocation7 [shape = 'u8[32768]{0}', space=vmem, size = 0x8000, scoped, tag = 'output window, operand 0']
    #allocation8 [shape = 'u8[32768]{0}', space=vmem, size = 0x8000, scoped, tag = 'output window, operand 1']
    #allocation9 [shape = 's32[2]{0}', space=sflag, size = 0x8, scoped, tag = 'scoped memory for tpu_custom_call.1']
    #allocation10 [shape = 'u8[32768]{0}', space=vmem, size = 0x8000, scoped, tag = 'output window, operand 2']
    %13 = vsyncpa [#allocation3], 0
    %s14 = scalar_lea.sflag [#allocation3], 1
    %15 = vsyncpa %s14, 0
    %16 = vsyncpa [#allocation6], 0
    %17 = vsyncpa [#allocation4], 0
    %s18 = scalar_lea.sflag [#allocation4], 1
    %19 = vsyncpa %s18, 0
    %20 = vsyncpa [#allocation9], 0
    %s21 = scalar_lea.sflag [#allocation9], 1
    %22 = vsyncpa %s21, 0
    loop: start=0, step=1, limit=4
    $region2: #{tpu_custom_call.1} parent=1 // loop_pre_header
      _
    $region3: #{tpu_custom_call.1} parent=1 // loop_header
      %s24 = sphi 0, %s28
      %p25 = scmp.ge.s32.totalorder %s24, 4
      %s31 = sphi 0, %s43
      %s32 = sphi 0, %s39
      %s33 = sphi 0, %s31
      %s34 = sphi 0, %s32
      %s35 = sphi 0, %s33
      %s36 = sphi 0, %s34
      %s48 = sphi 0, %s50
      %s51 = sphi 0, %s48
      %s52 = sphi 0, %s51
      %s68 = sphi 0, %s52
      %s72 = sphi 0, %s72
      %s74 = sphi 0, %s72
      %s75 = sphi 0, %s74
      %s89 = sphi 0, %s75
      %s93 = sphi 0, %s93
      %s95 = sphi 0, %s93
      %s96 = sphi 0, %s95
      %s110 = sphi 0, %s96
      %s114 = sphi 0, %s114
      %s116 = sphi 0, %s114
      %s117 = sphi 0, %s116
      %s131 = sphi 0, %s117
      %s135 = sphi 0, %s135
      %s137 = sphi 0, %s135
      %s138 = sphi 0, %s137
      %s152 = sphi 0, %s138
      %s160 = sphi 0, %s162
      %s163 = sphi 0, %s160
      %s164 = sphi 0, %s163
      %s180 = sphi 0, %s164
      %s188 = sphi 0, %s190
      %s191 = sphi 0, %s188
      %s192 = sphi 0, %s191
      %s208 = sphi 0, %s192
      %s216 = sphi 0, %s218
      %s219 = sphi 0, %s216
      %s220 = sphi 0, %s219
      %s236 = sphi 0, %s220
    $region4: #{tpu_custom_call.1} parent=1 // loop_header_branch
      %27 = sbr.rel (%p25) target = $region8
    $region5: #{tpu_custom_call.1} parent=1 // loop_body
      %s29 = ssub.s32 %s24, 1
      %s30 = ssub.s32 %s24, 2
      %s37 = sadd.s32 1, %s32
      %p38 = scmp.ge.s32.totalorder %s37, 1
      %s39 = scalar_select %p38, 0, %s37
      %s40 = sadd.s32 1, %s31
      %s41 = scalar_select %p38, %s40, %s31
      %p42 = scmp.ge.s32.totalorder %s41, 2
      %s43 = scalar_select %p42, 0, %s41
      %s44 = ssub.s32 %s31, %s43
      %s45 = ssub.s32 %s32, %s39
      %s46 = sor.u32 %s44, %s45
      %p47 = scmp.eq.s32.totalorder %s46, 0
      %s49 = sadd.s32 %s48, 1
      %s50 = scalar_select %p47, %s48, %s49
      %p53 = pneg %p47
      %p54 = scmp.eq.s32.totalorder %s24, 1
      %p55 = por %p53, %p54
      %p56 = scmp.ne.s32.totalorder %s48, %s51
      %p57 = scmp.eq.s32.totalorder %s24, 0
      %p58 = por %p56, %p57
      %p59 = scmp.ne.s32.totalorder %s48, %s51
      %p60 = scmp.eq.s32.totalorder %s29, 1
      %p61 = por %p59, %p60
      %p62 = scmp.ne.s32.totalorder %s51, %s52
      %p63 = scmp.eq.s32.totalorder %s29, 0
      %p64 = por %p62, %p63
      %p65 = scmp.ne.s32.totalorder %s51, %s52
      %p66 = scmp.eq.s32.totalorder %s30, 1
      %p67 = por %p65, %p66
      %p69 = scmp.ne.s32.totalorder %s52, %s68
      %p70 = scmp.eq.s32.totalorder %s30, 0
      %p71 = por %p69, %p70
      %s73 = sadd.s32 %s72, 1
      %p76 = scmp.eq.s32.totalorder %s24, 1
      %p77 = scmp.ne.s32.totalorder %s72, %s74
      %p78 = scmp.eq.s32.totalorder %s24, 0
      %p79 = por %p77, %p78
      %p80 = scmp.ne.s32.totalorder %s72, %s74
      %p81 = scmp.eq.s32.totalorder %s29, 1
      %p82 = por %p80, %p81
      %p83 = scmp.ne.s32.totalorder %s74, %s75
      %p84 = scmp.eq.s32.totalorder %s29, 0
      %p85 = por %p83, %p84
      %p86 = scmp.ne.s32.totalorder %s74, %s75
      %p87 = scmp.eq.s32.totalorder %s30, 1
      %p88 = por %p86, %p87
      %p90 = scmp.ne.s32.totalorder %s75, %s89
      %p91 = scmp.eq.s32.totalorder %s30, 0
      %p92 = por %p90, %p91
      %s94 = sadd.s32 %s93, 1
      %p97 = scmp.eq.s32.totalorder %s24, 1
      %p98 = scmp.ne.s32.totalorder %s93, %s95
      %p99 = scmp.eq.s32.totalorder %s24, 0
      %p100 = por %p98, %p99
      %p101 = scmp.ne.s32.totalorder %s93, %s95
      %p102 = scmp.eq.s32.totalorder %s29, 1
      %p103 = por %p101, %p102
      %p104 = scmp.ne.s32.totalorder %s95, %s96
      %p105 = scmp.eq.s32.totalorder %s29, 0
      %p106 = por %p104, %p105
      %p107 = scmp.ne.s32.totalorder %s95, %s96
      %p108 = scmp.eq.s32.totalorder %s30, 1
      %p109 = por %p107, %p108
      %p111 = scmp.ne.s32.totalorder %s96, %s110
      %p112 = scmp.eq.s32.totalorder %s30, 0
      %p113 = por %p111, %p112
      %s115 = sadd.s32 %s114, 1
      %p118 = scmp.eq.s32.totalorder %s24, 1
      %p119 = scmp.ne.s32.totalorder %s114, %s116
      %p120 = scmp.eq.s32.totalorder %s24, 0
      %p121 = por %p119, %p120
      %p122 = scmp.ne.s32.totalorder %s114, %s116
      %p123 = scmp.eq.s32.totalorder %s29, 1
      %p124 = por %p122, %p123
      %p125 = scmp.ne.s32.totalorder %s116, %s117
      %p126 = scmp.eq.s32.totalorder %s29, 0
      %p127 = por %p125, %p126
      %p128 = scmp.ne.s32.totalorder %s116, %s117
      %p129 = scmp.eq.s32.totalorder %s30, 1
      %p130 = por %p128, %p129
      %p132 = scmp.ne.s32.totalorder %s117, %s131
      %p133 = scmp.eq.s32.totalorder %s30, 0
      %p134 = por %p132, %p133
      %s136 = sadd.s32 %s135, 1
      %p139 = scmp.eq.s32.totalorder %s24, 1
      %p140 = scmp.ne.s32.totalorder %s135, %s137
      %p141 = scmp.eq.s32.totalorder %s24, 0
      %p142 = por %p140, %p141
      %p143 = scmp.ne.s32.totalorder %s135, %s137
      %p144 = scmp.eq.s32.totalorder %s29, 1
      %p145 = por %p143, %p144
      %p146 = scmp.ne.s32.totalorder %s137, %s138
      %p147 = scmp.eq.s32.totalorder %s29, 0
      %p148 = por %p146, %p147
      %p149 = scmp.ne.s32.totalorder %s137, %s138
      %p150 = scmp.eq.s32.totalorder %s30, 1
      %p151 = por %p149, %p150
      %p153 = scmp.ne.s32.totalorder %s138, %s152
      %p154 = scmp.eq.s32.totalorder %s30, 0
      %p155 = por %p153, %p154
      %s156 = ssub.s32 %s31, %s43
      %s157 = ssub.s32 %s32, %s39
      %s158 = sor.u32 %s156, %s157
      %p159 = scmp.eq.s32.totalorder %s158, 0
      %s161 = sadd.s32 %s160, 1
      %s162 = scalar_select %p159, %s160, %s161
      %p165 = pneg %p159
      %p166 = scmp.eq.s32.totalorder %s24, 1
      %p167 = por %p165, %p166
      %p168 = scmp.ne.s32.totalorder %s160, %s163
      %p169 = scmp.eq.s32.totalorder %s24, 0
      %p170 = por %p168, %p169
      %p171 = scmp.ne.s32.totalorder %s160, %s163
      %p172 = scmp.eq.s32.totalorder %s29, 1
      %p173 = por %p171, %p172
      %p174 = scmp.ne.s32.totalorder %s163, %s164
      %p175 = scmp.eq.s32.totalorder %s29, 0
      %p176 = por %p174, %p175
      %p177 = scmp.ne.s32.totalorder %s163, %s164
      %p178 = scmp.eq.s32.totalorder %s30, 1
      %p179 = por %p177, %p178
      %p181 = scmp.ne.s32.totalorder %s164, %s180
      %p182 = scmp.eq.s32.totalorder %s30, 0
      %p183 = por %p181, %p182
      %s184 = ssub.s32 %s31, %s43
      %s185 = ssub.s32 %s32, %s39
      %s186 = sor.u32 %s184, %s185
      %p187 = scmp.eq.s32.totalorder %s186, 0
      %s189 = sadd.s32 %s188, 1
      %s190 = scalar_select %p187, %s188, %s189
      %p193 = pneg %p187
      %p194 = scmp.eq.s32.totalorder %s24, 1
      %p195 = por %p193, %p194
      %p196 = scmp.ne.s32.totalorder %s188, %s191
      %p197 = scmp.eq.s32.totalorder %s24, 0
      %p198 = por %p196, %p197
      %p199 = scmp.ne.s32.totalorder %s188, %s191
      %p200 = scmp.eq.s32.totalorder %s29, 1
      %p201 = por %p199, %p200
      %p202 = scmp.ne.s32.totalorder %s191, %s192
      %p203 = scmp.eq.s32.totalorder %s29, 0
      %p204 = por %p202, %p203
      %p205 = scmp.ne.s32.totalorder %s191, %s192
      %p206 = scmp.eq.s32.totalorder %s30, 1
      %p207 = por %p205, %p206
      %p209 = scmp.ne.s32.totalorder %s192, %s208
      %p210 = scmp.eq.s32.totalorder %s30, 0
      %p211 = por %p209, %p210
      %s212 = ssub.s32 %s31, %s43
      %s213 = ssub.s32 %s32, %s39
      %s214 = sor.u32 %s212, %s213
      %p215 = scmp.eq.s32.totalorder %s214, 0
      %s217 = sadd.s32 %s216, 1
      %s218 = scalar_select %p215, %s216, %s217
      %p221 = pneg %p215
      %p222 = scmp.eq.s32.totalorder %s24, 1
      %p223 = por %p221, %p222
      %p224 = scmp.ne.s32.totalorder %s216, %s219
      %p225 = scmp.eq.s32.totalorder %s24, 0
      %p226 = por %p224, %p225
      %p227 = scmp.ne.s32.totalorder %s216, %s219
      %p228 = scmp.eq.s32.totalorder %s29, 1
      %p229 = por %p227, %p228
      %p230 = scmp.ne.s32.totalorder %s219, %s220
      %p231 = scmp.eq.s32.totalorder %s29, 0
      %p232 = por %p230, %p231
      %p233 = scmp.ne.s32.totalorder %s219, %s220
      %p234 = scmp.eq.s32.totalorder %s30, 1
      %p235 = por %p233, %p234
      %p237 = scmp.ne.s32.totalorder %s220, %s236
      %p238 = scmp.eq.s32.totalorder %s30, 0
      %p239 = por %p237, %p238
      %p240 = scmp.le.s32.totalorder 1, %s24
      %p241 = scmp.lt.s32.totalorder %s24, 3
      %p242 = pnand %p240, %p241
      %p243 = pneg %p242
      // Predicated region
      $region9: #{tpu_custom_call.1} parent=5 // pred_check
        _
      $region10: #{tpu_custom_call.1} parent=5 // pred_check_branch
        %245 = sbr.rel (%p242) target = $region12
      $region11: #{tpu_custom_call.1} parent=5 // pred_region
        %s246 = ssub.s32 %s24, 1
        // Predicated region
        $region13: #{tpu_custom_call.1} parent=11 // pred_check
          %p247 = pneg %p85
        $region14: #{tpu_custom_call.1} parent=11 // pred_check_branch
          %249 = sbr.rel (%p247) target = $region16
        $region15: #{tpu_custom_call.1} parent=11 // pred_region
          _
        $region16: #{tpu_custom_call.1} parent=11 // pred_fallthru
          _
        // Predicated region
        $region17: #{tpu_custom_call.1} parent=11 // pred_check
          %p250 = pneg %p106
        $region18: #{tpu_custom_call.1} parent=11 // pred_check_branch
          %252 = sbr.rel (%p250) target = $region20
        $region19: #{tpu_custom_call.1} parent=11 // pred_region
          _
        $region20: #{tpu_custom_call.1} parent=11 // pred_fallthru
          _
        // Predicated region
        $region21: #{tpu_custom_call.1} parent=11 // pred_check
          %p253 = pneg %p127
        $region22: #{tpu_custom_call.1} parent=11 // pred_check_branch
          %255 = sbr.rel (%p253) target = $region24
        $region23: #{tpu_custom_call.1} parent=11 // pred_region
          %s257 = ssub.s32 1024, 1024
          %258 = vsyncadd [#allocation6], %s257
          %s259 = sshll.u32 [#allocation5], 4
          %s260 = int_to_ptr.vmem [resolvable:$true] %s259
          %265 = dma.hbm_to_vmem [thread:$0]  %s3, 1024, %s260, [#allocation6], 128, 128, 8
        $region24: #{tpu_custom_call.1} parent=11 // pred_fallthru
          _
        // Predicated region
        $region25: #{tpu_custom_call.1} parent=11 // pred_check
          %p266 = pneg %p148
        $region26: #{tpu_custom_call.1} parent=11 // pred_check_branch
          %268 = sbr.rel (%p266) target = $region28
        $region27: #{tpu_custom_call.1} parent=11 // pred_region
          _
        $region28: #{tpu_custom_call.1} parent=11 // pred_fallthru
          _
      $region12: #{tpu_custom_call.1} parent=5 // pred_fallthru
        _
      %p269 = scmp.lt.s32.totalorder %s24, 2
      // Predicated region
      $region29: #{tpu_custom_call.1} parent=5 // pred_check
        %p270 = pneg %p269
      $region30: #{tpu_custom_call.1} parent=5 // pred_check_branch
        %272 = sbr.rel (%p270) target = $region32
      $region31: #{tpu_custom_call.1} parent=5 // pred_region
        // Predicated region
        $region33: #{tpu_custom_call.1} parent=31 // pred_check
          %p273 = pneg %p58
        $region34: #{tpu_custom_call.1} parent=31 // pred_check_branch
          %275 = sbr.rel (%p273) target = $region36
        $region35: #{tpu_custom_call.1} parent=31 // pred_region
          %s276 = sand.u32 %s48, 1
          %s277 = scalar_lea.sflag [#allocation3], %s276
          %s278 = sand.u32 %s48, 1
          %s279 = smul.addr %s278, 16
          %s280 = scalar_lea.vmem [#allocation2], %s279
          %s281 = smul.u32 2, %s32
          %s283 = ssub.s32 256, 256
          %284 = vsyncadd %s277, %s283
          %s285 = smul.addr %s31, 2
          %s286 = sadd.s32 %s281, %s285
          %s287 = smul.addr %s286, 128
          %s288 = scalar_lea.hbm %s0, %s287
          %s289 = sshll.u32 %s280, 4
          %s290 = int_to_ptr.vmem [resolvable:$true] %s289
          %295 = dma.hbm_to_vmem [thread:$0]  %s288, 256, %s290, %s277, 128, 128, 8
        $region36: #{tpu_custom_call.1} parent=31 // pred_fallthru
          _
      $region32: #{tpu_custom_call.1} parent=5 // pred_fallthru
        _
      %p296 = scmp.le.s32.totalorder 1, %s24
      %p297 = scmp.lt.s32.totalorder %s24, 3
      %p298 = pnand %p296, %p297
      %p299 = pneg %p298
      // Predicated region
      $region37: #{tpu_custom_call.1} parent=5 // pred_check
        _
      $region38: #{tpu_custom_call.1} parent=5 // pred_check_branch
        %301 = sbr.rel (%p298) target = $region40
      $region39: #{tpu_custom_call.1} parent=5 // pred_region
        %s302 = ssub.s32 %s24, 1
        %s303 = sand.u32 %s51, 1
        %s304 = scalar_lea.sflag [#allocation3], %s303
        %s305 = sand.u32 %s51, 1
        %s306 = smul.addr %s305, 16
        %s307 = scalar_lea.vmem [#allocation2], %s306
        // Predicated region
        $region41: #{tpu_custom_call.1} parent=39 // pred_check
          %p308 = pneg %p64
        $region42: #{tpu_custom_call.1} parent=39 // pred_check_branch
          %310 = sbr.rel (%p308) target = $region44
        $region43: #{tpu_custom_call.1} parent=39 // pred_region
          %311 = dma.done %s304, 256
        $region44: #{tpu_custom_call.1} parent=39 // pred_fallthru
          _
        // Predicated region
        $region45: #{tpu_custom_call.1} parent=39 // pred_check
          %p312 = pneg %p127
        $region46: #{tpu_custom_call.1} parent=39 // pred_check_branch
          %314 = sbr.rel (%p312) target = $region48
        $region47: #{tpu_custom_call.1} parent=39 // pred_region
          %315 = dma.done [#allocation6], 1024
        $region48: #{tpu_custom_call.1} parent=39 // pred_fallthru
          _
        %s316 = sand.u32 %s51, 1
        %s317 = scalar_lea.sflag [#allocation3], %s316
        %s318 = sand.u32 %s51, 1
        %s319 = smul.addr %s318, 16
        %s320 = scalar_lea.vmem [#allocation2], %s319
        %p321 = pneg %p64
        %p322 = pneg %p61
        %p323 = pneg %p85
        %p324 = pneg %p82
        %p325 = pneg %p106
        %p326 = pneg %p103
        %p327 = pneg %p127
        %p328 = pneg %p124
        %p329 = pneg %p148
        %p330 = pneg %p145
        %p331 = pneg %p176
        %p332 = pneg %p173
        %s333 = sand.u32 %s163, 1
        %s334 = scalar_lea.sflag [#allocation4], %s333
        %s335 = sand.u32 %s163, 1
        %s336 = smul.addr %s335, 32
        %s337 = scalar_lea.vmem [#allocation7], %s336
        %p338 = pneg %p204
        %p339 = pneg %p201
        %s340 = sand.u32 %s29, 1
        %s341 = scalar_lea.sflag [#allocation9], %s340
        %s342 = sand.u32 %s191, 1
        %s343 = smul.addr %s342, 32
        %s344 = scalar_lea.vmem [#allocation8], %s343
        %p345 = pneg %p232
        %p346 = pneg %p229
        %s347 = sand.u32 %s29, 1
        %s348 = scalar_lea.sflag [#allocation9], %s347
        %s349 = sand.u32 %s219, 1
        %s350 = smul.addr %s349, 32
        %s351 = scalar_lea.vmem [#allocation10], %s350
        %s352 = smul.u32 2, %s34
        %s353 = smul.u32 2, %s34
        %s354 = smul.u32 2, %s34
        %s355 = smul.u32 2, %s34
        %v357 = vld [vmem:[%s307] sm:$0xff]
        %v358 = vld [vmem:[%s307 + $0x8] sm:$0xff]
        %v359 = vld [vmem:[%s1] sm:$0x1]
        %v360 = vld [vmem:[%s2] sm:$0x1]
        %vm361 = vcmask 523264
        %v362 = vsel %vm361, %v357, 0.0
        %363 = vadd.xlane.f32.xlu0 %v362
        %v364 = vpop.xlane.xlu0 %363
        %v365 = vsel %vm361, %v358, 0.0
        %366 = vadd.xlane.f32.xlu0 %v365
        %v367 = vpop.xlane.xlu0 %366
        %v368 = vrcp.pop 64.0
        %v369 = vmul.f32 %v364, %v368
        %v370 = vmul.f32 %v367, %v368
        %v371 = vsub.f32 %v357, %v369
        %v372 = vsub.f32 %v358, %v370
        %v373 = vmul.f32 %v371, %v371
        %v374 = vmul.f32 %v372, %v372
        %v375 = vsel %vm361, %v373, 0.0
        %376 = vadd.xlane.f32.xlu0 %v375
        %v377 = vpop.xlane.xlu0 %376
        %v378 = vsel %vm361, %v374, 0.0
        %379 = vadd.xlane.f32.xlu0 %v378
        %v380 = vpop.xlane.xlu0 %379
        %v381 = vmul.f32 %v377, %v368
        %v382 = vmul.f32 %v380, %v368
        %v383 = vadd.f32 %v381, 1e-05
        %v384 = vadd.f32 %v382, 1e-05
        %v385 = vrsqrt.pop %v383
        %v386 = vrsqrt.pop %v384
        %v387 = vmul.f32 %v371, %v385
        %v388 = vmul.f32 %v372, %v386
        %v390 = vlaneseq
        %v391 = vshrl.u32 %v390, 7
        %v392 = vsub.s32 0, %v391
        %v393 = vrot.slane %v359, %v392
        %v395 = vmul.f32 %v387, %v393
        %v396 = vmul.f32 %v388, %v393
        %v398 = vlaneseq
        %v399 = vshrl.u32 %v398, 7
        %v400 = vsub.s32 0, %v399
        %v401 = vrot.slane %v360, %v400
        %v403 = vadd.f32 %v395, %v401
        %v404 = vadd.f32 %v396, %v401
        %v405 = vpack.c.bf16 %v404, %v403
        %v406 = vld [vmem:[#allocation5] sm:$0xff]
        %v407 = vld [vmem:[#allocation5 + $0x8] sm:$0xff]
        %v408 = vld [vmem:[#allocation5 + $0x10] sm:$0xff]
        %v409 = vld [vmem:[#allocation5 + $0x18] sm:$0xff]
        %v410 = vld [vmem:[#allocation5 + $0x20] sm:$0xff]
        %v411 = vld [vmem:[#allocation5 + $0x28] sm:$0xff]
        %v412 = vld [vmem:[#allocation5 + $0x30] sm:$0xff]
        %v413 = vld [vmem:[#allocation5 + $0x38] sm:$0xff]
        %v414 = vld [vmem:[%s4] sm:$0x3]
        %v416 = vlaneseq
        %v417 = vshrl.u32 %v416, 7
        %v418 = vsub.s32 0, %v417
        %v419 = vrot.slane %v414, %v418
        %v420 = vlaneseq
        %v421 = vshrl.u32 %v420, 7
        %v422 = vsub.s32 1, %v421
        %v423 = vrot.slane %v414, %v422
        %v434 = vunpack.c.l.b16 %v406
        %v435 = vunpack.c.h.b16 %v406
        %v436 = vunpack.c.l.b16 %v407
        %v437 = vunpack.c.h.b16 %v407
        %v438 = vunpack.c.l.b16 %v408
        %v439 = vunpack.c.h.b16 %v408
        %v440 = vunpack.c.l.b16 %v409
        %v441 = vunpack.c.h.b16 %v409
        %v442 = vunpack.c.l.b16 %v410
        %v443 = vunpack.c.h.b16 %v410
        %v444 = vunpack.c.l.b16 %v411
        %v445 = vunpack.c.h.b16 %v411
        %v446 = vunpack.c.l.b16 %v412
        %v447 = vunpack.c.h.b16 %v412
        %v448 = vunpack.c.l.b16 %v413
        %v449 = vunpack.c.h.b16 %v413
        %v450 = vpack.c.b16 %v436, %v434
        %v451 = vpack.c.b16 %v437, %v435
        %v452 = vpack.c.b16 %v440, %v438
        %v453 = vpack.c.b16 %v441, %v439
        %v454 = vpack.c.b16 %v444, %v442
        %v455 = vpack.c.b16 %v445, %v443
        %v456 = vpack.c.b16 %v448, %v446
        %v457 = vpack.c.b16 %v449, %v447
        %v467 = vsel %vm361, %v405, 0
        %469 = vmatprep.subr.bf16.mxu0 %v451
        %470 = vmatpush1.bf16.msra.mxu0 %v450
        %471 = vmatprep.subr.bf16.mxu0 %v453
        %472 = vmatpush1.bf16.msra.mxu0 %v452
        %473 = vmatprep.subr.bf16.mxu0 %v455
        %474 = vmatpush1.bf16.msra.mxu0 %v454
        %475 = vmatprep.subr.bf16.mxu0 %v457
        %476 = vmatpush1.bf16.msra.mxu0 %v456
        %477 = vmatprep.subr.bf16.mxu0 0
        %478 = vmatpush1.bf16.msra.mxu0 0
        %479 = vmatprep.subr.bf16.mxu0 0
        %480 = vmatpush1.bf16.msra.mxu0 0
        %481 = vmatprep.subr.bf16.mxu0 0
        %482 = vmatpush1.bf16.msra.mxu0 0
        %483 = vmatprep.subr.bf16.mxu0 0
        %484 = vmatpush1.bf16.msra.mxu0 0
        %485 = vmatprep.subr.bf16.mxu0 0
        %486 = vmatpush1.bf16.msra.mxu0 0
        %487 = vmatprep.subr.bf16.mxu0 0
        %488 = vmatpush1.bf16.msra.mxu0 0
        %489 = vmatprep.subr.bf16.mxu0 0
        %490 = vmatpush1.bf16.msra.mxu0 0
        %491 = vmatprep.subr.bf16.mxu0 0
        %492 = vmatpush1.bf16.msra.mxu0 0
        %493 = vmatprep.subr.bf16.mxu0 0
        %494 = vmatpush1.bf16.msra.mxu0 0
        %495 = vmatprep.subr.bf16.mxu0 0
        %496 = vmatpush1.bf16.msra.mxu0 0
        %497 = vmatprep.subr.bf16.mxu0 0
        %498 = vmatpush1.bf16.msra.mxu0 0
        %499 = vmatprep.subr.bf16.mxu0 0
        %500 = vmatpush1.bf16.msra.mxu0 0
        %501 = vmatprep.mubr.bf16.mxu0 0
        %502 = vmatmul.mubr.bf16.gmra.mrb[0].mxu0 %v467
        %v503 = vpop.f32.mrb[0].mxu0
        %v504 = vadd.f32 %v419, %v503
        %v505 = vpop.f32.mrb[0].mxu0
        %v506 = vadd.f32 %v423, %v505
        %v507 = vpop.f32.mrb[0].mxu0
        %v508 = vadd.f32 %v419, %v507
        %v509 = vpop.f32.mrb[0].mxu0
        %v510 = vadd.f32 %v423, %v509
        %511 = vdwg.mxu0
        %v512 = vpack.c.bf16 %v508, %v504
        %v513 = vpack.c.bf16 %v510, %v506
        %v515 = vunpack.c.l.b16 %v512
        %v516 = vunpack.c.h.b16 %v512
        %v517 = vpack.c.b16 %v515, %v515
        %v518 = vpack.c.b16 %v516, %v516
        %vm521 = vcmask 125952
        %522 = vst.msk [vmem:[%s337] sm:$0xf] %vm521, %v517
        %523 = vst.msk [vmem:[%s337 + $0x4] sm:$0xf] %vm521, %v518
        %524 = vrot.lane.b32.xlu0 %v517, 112
        %v525 = vpop.permute.xlu0 %524
        %526 = vrot.lane.b32.xlu0 %v518, 112
        %v527 = vpop.permute.xlu0 %526
        %530 = vst.msk [vmem:[%s344] sm:$0xf] %vm521, %v525
        %531 = vst.msk [vmem:[%s344 + $0x4] sm:$0xf] %vm521, %v527
        %532 = vrot.lane.b32.xlu0 %v517, 96
        %v533 = vpop.permute.xlu0 %532
        %534 = vrot.lane.b32.xlu0 %v518, 96
        %v535 = vpop.permute.xlu0 %534
        %538 = vst.msk [vmem:[%s351] sm:$0xf] %vm521, %v533
        %539 = vst.msk [vmem:[%s351 + $0x4] sm:$0xf] %vm521, %v535
        %540 = vrot.lane.b32.xlu0 %v517, 80
        %v541 = vpop.permute.xlu0 %540
        %542 = vrot.lane.b32.xlu0 %v518, 80
        %v543 = vpop.permute.xlu0 %542
        %s546 = scalar_lea.vmem %s337, 8 [#allocation7]
        %547 = vst.msk [vmem:[%s546] sm:$0xf] %vm521, %v541
        %548 = vst.msk [vmem:[%s546 + $0x4] sm:$0xf] %vm521, %v543
        %549 = vrot.lane.b32.xlu0 %v517, 64
        %v550 = vpop.permute.xlu0 %549
        %551 = vrot.lane.b32.xlu0 %v518, 64
        %v552 = vpop.permute.xlu0 %551
        %s555 = scalar_lea.vmem %s344, 8 [#allocation8]
        %556 = vst.msk [vmem:[%s555] sm:$0xf] %vm521, %v550
        %557 = vst.msk [vmem:[%s555 + $0x4] sm:$0xf] %vm521, %v552
        %558 = vrot.lane.b32.xlu0 %v517, 48
        %v559 = vpop.permute.xlu0 %558
        %560 = vrot.lane.b32.xlu0 %v518, 48
        %v561 = vpop.permute.xlu0 %560
        %s564 = scalar_lea.vmem %s351, 8 [#allocation10]
        %565 = vst.msk [vmem:[%s564] sm:$0xf] %vm521, %v559
        %566 = vst.msk [vmem:[%s564 + $0x4] sm:$0xf] %vm521, %v561
        %567 = vrot.lane.b32.xlu0 %v517, 32
        %v568 = vpop.permute.xlu0 %567
        %569 = vrot.lane.b32.xlu0 %v518, 32
        %v570 = vpop.permute.xlu0 %569
        %s573 = scalar_lea.vmem %s337, 16 [#allocation7]
        %574 = vst.msk [vmem:[%s573] sm:$0xf] %vm521, %v568
        %575 = vst.msk [vmem:[%s573 + $0x4] sm:$0xf] %vm521, %v570
        %576 = vrot.lane.b32.xlu0 %v517, 16
        %v577 = vpop.permute.xlu0 %576
        %578 = vrot.lane.b32.xlu0 %v518, 16
        %v579 = vpop.permute.xlu0 %578
        %s582 = scalar_lea.vmem %s344, 16 [#allocation8]
        %583 = vst.msk [vmem:[%s582] sm:$0xf] %vm521, %v577
        %584 = vst.msk [vmem:[%s582 + $0x4] sm:$0xf] %vm521, %v579
        %v586 = vunpack.c.l.b16 %v513
        %v587 = vunpack.c.h.b16 %v513
        %v588 = vpack.c.b16 %v586, %v586
        %v589 = vpack.c.b16 %v587, %v587
        %s592 = scalar_lea.vmem %s351, 16 [#allocation10]
        %593 = vst.msk [vmem:[%s592] sm:$0xf] %vm521, %v588
        %594 = vst.msk [vmem:[%s592 + $0x4] sm:$0xf] %vm521, %v589
        %595 = vrot.lane.b32.xlu0 %v588, 112
        %v596 = vpop.permute.xlu0 %595
        %597 = vrot.lane.b32.xlu0 %v589, 112
        %v598 = vpop.permute.xlu0 %597
        %s601 = scalar_lea.vmem %s337, 24 [#allocation7]
        %602 = vst.msk [vmem:[%s601] sm:$0xf] %vm521, %v596
        %603 = vst.msk [vmem:[%s601 + $0x4] sm:$0xf] %vm521, %v598
        %604 = vrot.lane.b32.xlu0 %v588, 96
        %v605 = vpop.permute.xlu0 %604
        %606 = vrot.lane.b32.xlu0 %v589, 96
        %v607 = vpop.permute.xlu0 %606
        %s610 = scalar_lea.vmem %s344, 24 [#allocation8]
        %611 = vst.msk [vmem:[%s610] sm:$0xf] %vm521, %v605
        %612 = vst.msk [vmem:[%s610 + $0x4] sm:$0xf] %vm521, %v607
        %613 = vrot.lane.b32.xlu0 %v588, 80
        %v614 = vpop.permute.xlu0 %613
        %615 = vrot.lane.b32.xlu0 %v589, 80
        %v616 = vpop.permute.xlu0 %615
        %s619 = scalar_lea.vmem %s351, 24 [#allocation10]
        %620 = vst.msk [vmem:[%s619] sm:$0xf] %vm521, %v614
        %621 = vst.msk [vmem:[%s619 + $0x4] sm:$0xf] %vm521, %v616
        %s622 = sand.u32 %s163, 1
        %s623 = scalar_lea.sflag [#allocation4], %s622
        %s624 = sand.u32 %s163, 1
        %s625 = smul.addr %s624, 32
        %s626 = scalar_lea.vmem [#allocation7], %s625
        %s627 = sand.u32 %s29, 1
        %s628 = scalar_lea.sflag [#allocation9], %s627
        %s629 = sand.u32 %s191, 1
        %s630 = smul.addr %s629, 32
        %s631 = scalar_lea.vmem [#allocation8], %s630
        %s632 = sand.u32 %s29, 1
        %s633 = scalar_lea.sflag [#allocation9], %s632
        %s634 = sand.u32 %s219, 1
        %s635 = smul.addr %s634, 32
        %s636 = scalar_lea.vmem [#allocation10], %s635
        // Predicated region
        $region49: #{tpu_custom_call.1} parent=39 // pred_check
          %p637 = pneg %p173
        $region50: #{tpu_custom_call.1} parent=39 // pred_check_branch
          %639 = sbr.rel (%p637) target = $region52
        $region51: #{tpu_custom_call.1} parent=39 // pred_region
          %s640 = smul.u32 2, %s34
          %s642 = ssub.s32 512, 512
          %643 = vsyncadd %s623, %s642
          %s644 = smul.addr %s33, 8
          %s645 = sadd.s32 %s640, %s644
          %s646 = smul.addr %s645, 64
          %s647 = scalar_lea.hbm %s5, %s646
          %s648 = sshll.u32 %s626, 4
          %s649 = int_to_ptr.vmem [resolvable:$true] %s648
          %654 = dma.vmem_to_hbm [thread:$0]  %s649, 512, %s647, %s623, 64, 64, 4
        $region52: #{tpu_custom_call.1} parent=39 // pred_fallthru
          _
        // Predicated region
        $region53: #{tpu_custom_call.1} parent=39 // pred_check
          %p655 = pneg %p201
        $region54: #{tpu_custom_call.1} parent=39 // pred_check_branch
          %657 = sbr.rel (%p655) target = $region56
        $region55: #{tpu_custom_call.1} parent=39 // pred_region
          %s658 = smul.u32 2, %s34
          %s660 = ssub.s32 512, 512
          %661 = vsyncadd %s628, %s660
          %s662 = smul.addr %s33, 8
          %s663 = sadd.s32 %s658, %s662
          %s664 = smul.addr %s663, 64
          %s665 = scalar_lea.hbm %s6, %s664
          %s666 = sshll.u32 %s631, 4
          %s667 = int_to_ptr.vmem [resolvable:$true] %s666
          %672 = dma.vmem_to_hbm [thread:$0]  %s667, 512, %s665, %s628, 64, 64, 4
        $region56: #{tpu_custom_call.1} parent=39 // pred_fallthru
          _
        // Predicated region
        $region57: #{tpu_custom_call.1} parent=39 // pred_check
          %p673 = pneg %p229
        $region58: #{tpu_custom_call.1} parent=39 // pred_check_branch
          %675 = sbr.rel (%p673) target = $region60
        $region59: #{tpu_custom_call.1} parent=39 // pred_region
          %s676 = smul.u32 2, %s34
          %s678 = ssub.s32 512, 512
          %679 = vsyncadd %s633, %s678
          %s680 = smul.addr %s33, 8
          %s681 = sadd.s32 %s676, %s680
          %s682 = smul.addr %s681, 64
          %s683 = scalar_lea.hbm %s7, %s682
          %s684 = sshll.u32 %s636, 4
          %s685 = int_to_ptr.vmem [resolvable:$true] %s684
          %690 = dma.vmem_to_hbm [thread:$0]  %s685, 512, %s683, %s633, 64, 64, 4
        $region60: #{tpu_custom_call.1} parent=39 // pred_fallthru
          _
      $region40: #{tpu_custom_call.1} parent=5 // pred_fallthru
        _
      %p691 = scmp.le.s32.totalorder 2, %s24
      // Predicated region
      $region61: #{tpu_custom_call.1} parent=5 // pred_check
        %p692 = pneg %p691
      $region62: #{tpu_custom_call.1} parent=5 // pred_check_branch
        %694 = sbr.rel (%p692) target = $region64
      $region63: #{tpu_custom_call.1} parent=5 // pred_region
        %s695 = ssub.s32 %s24, 2
        // Predicated region
        $region65: #{tpu_custom_call.1} parent=63 // pred_check
          %p696 = pneg %p179
        $region66: #{tpu_custom_call.1} parent=63 // pred_check_branch
          %698 = sbr.rel (%p696) target = $region68
        $region67: #{tpu_custom_call.1} parent=63 // pred_region
          %s699 = sand.u32 %s164, 1
          %s700 = scalar_lea.sflag [#allocation4], %s699
          %s701 = sand.u32 %s164, 1
          %s702 = smul.addr %s701, 32
          %s703 = scalar_lea.vmem [#allocation7], %s702
          %704 = dma.done %s700, 512
        $region68: #{tpu_custom_call.1} parent=63 // pred_fallthru
          _
        // Predicated region
        $region69: #{tpu_custom_call.1} parent=63 // pred_check
          %p705 = pneg %p207
        $region70: #{tpu_custom_call.1} parent=63 // pred_check_branch
          %707 = sbr.rel (%p705) target = $region72
        $region71: #{tpu_custom_call.1} parent=63 // pred_region
          %s708 = sand.u32 %s30, 1
          %s709 = scalar_lea.sflag [#allocation9], %s708
          %s710 = sand.u32 %s192, 1
          %s711 = smul.addr %s710, 32
          %s712 = scalar_lea.vmem [#allocation8], %s711
          %713 = dma.done %s709, 512
        $region72: #{tpu_custom_call.1} parent=63 // pred_fallthru
          _
        // Predicated region
        $region73: #{tpu_custom_call.1} parent=63 // pred_check
          %p714 = pneg %p235
        $region74: #{tpu_custom_call.1} parent=63 // pred_check_branch
          %716 = sbr.rel (%p714) target = $region76
        $region75: #{tpu_custom_call.1} parent=63 // pred_region
          %s717 = sand.u32 %s30, 1
          %s718 = scalar_lea.sflag [#allocation9], %s717
          %s719 = sand.u32 %s220, 1
          %s720 = smul.addr %s719, 32
          %s721 = scalar_lea.vmem [#allocation10], %s720
          %722 = dma.done %s718, 512
        $region76: #{tpu_custom_call.1} parent=63 // pred_fallthru
          _
      $region64: #{tpu_custom_call.1} parent=5 // pred_fallthru
        _
    $region6: #{tpu_custom_call.1} parent=1 // loop_footer
      %s28 = sadd.s32 1, %s24
    $region7: #{tpu_custom_call.1} parent=1 // loop_footer_branch
      %23 = sbr.rel target = $region3
    $region8: #{tpu_custom_call.1} parent=1 // loop_exit
      _
    %723 = vsyncpa [#allocation3], 1
    %s724 = scalar_lea.sflag [#allocation3], 1
    %725 = vsyncpa %s724, 1
    %726 = vsyncpa [#allocation6], 1
    %727 = vsyncpa [#allocation4], 1
    %s728 = scalar_lea.sflag [#allocation4], 1
    %729 = vsyncpa %s728, 1
    %730 = vsyncpa [#allocation9], 1
    %s731 = scalar_lea.sflag [#allocation9], 1
    %732 = vsyncpa %s731, 1

</llo_original>
